<compile_context>
chip_gen: v5e
topology: v5e:2x2
jax: 0.10.0
libtpu: 0.0.40
codegen_flags: <defaults>
</compile_context>

<pallas_src>
import functools
import math

import jax
import jax.numpy as jnp
import numpy as np
from jax.experimental import pallas as pl
from jax.experimental.pallas import tpu as pltpu


def _eca_kernel(w_ref, x_ref, o_ref, *, k, inv_hw):
    """w_ref: (k,) f32 in SMEM.  x_ref / o_ref: (TB, C, HW) blocks in VMEM."""
    tb, c, hw = x_ref.shape
    pad = (k - 1) // 2

    # --- global average pool over spatial (lane-axis reduce, f32 accumulate) ---
    pooled = jnp.sum(x_ref[...], axis=-1, dtype=jnp.float32) * inv_hw   # (TB, C)

    # --- k-tap 1-D conv along channels: shift-and-add + zero-pad edge mask ---
    # y[ch] = sum_j w[j] * pooled[ch + j - pad]   (zero outside [0, C))
    lane = jax.lax.broadcasted_iota(jnp.int32, (tb, c), 1)              # channel idx
    y = jnp.zeros((tb, c), jnp.float32)
    for j in range(k):                                  # k is tiny (3..7) & static
        d = j - pad                                     # source offset
        if d == 0:
            shifted = pooled
        else:
            # roll(x, s)[i] = x[(i - s) mod C]  ->  s = (-d) mod C gives x[i + d]
            shifted = pltpu.roll(pooled, shift=(-d) % c, axis=1)
        valid = (lane >= -d) & (lane < c - d)           # zero padding at the edges
        y = y + w_ref[j] * jnp.where(valid, shifted, 0.0)

    # --- sigmoid gate (EUP) + broadcast multiply in the input dtype (VPU bulk) ---
    gate = jax.nn.sigmoid(y).astype(o_ref.dtype)        # (TB, C)
    # Re-read x from VMEM rather than keeping a full-block value live.
    o_ref[...] = (x_ref[...] * gate[:, :, None]).astype(o_ref.dtype)


def _tpu_block_params():
    """Return (target_block_bytes, vmem_limit_bytes) tuned per TPU generation."""
    try:
        vmem_cap = int(pltpu.get_tpu_info().vmem_capacity_bytes)
    except Exception:
        vmem_cap = 64 << 20                      # conservative (v7x-sized) fallback
    if vmem_cap <= (64 << 20):
        # v7x: 64 MiB physical VMEM, 3.2 TB/s HBM -> bigger blocks, capped limit.
        return (7 << 20), (44 << 20)
    # v5e / v6e: 128 MiB physical VMEM; raise the scoped limit explicitly so a
    # ~4 MiB block (>=95% of measured HBM roofline) double-buffers comfortably.
    return (4 << 20), (28 << 20)


def _pick_block_batch(n, bytes_per_sample, target_bytes, vmem_limit_bytes):
    """Batch-block size: near target_bytes, within the VMEM budget, >=2 steps."""
    # in + out, each double-buffered -> ~4x the block resident; leave headroom.
    budget = max((vmem_limit_bytes - (2 << 20)) // 4, 1)
    per_block = min(target_bytes, budget)
    tb = max(1, per_block // max(bytes_per_sample, 1))
    tb = min(tb, n)
    if n >= 2:
        # Keep >= 2 grid steps so the "parallel" axis shards across v7x's 2 TCs.
        tb = min(tb, -(-n // 2))
    return int(tb)


def eca_forward(x, w):
    """x: (N, C, H, W), w: (k,) conv1d weights (no bias). Returns (N, C, H, W)."""
    n, c, h, wd = x.shape
    hw = h * wd
    k = int(w.shape[0])
    xf = x.reshape(n, c, hw)

    target_bytes, vmem_limit = _tpu_block_params()
    tb = _pick_block_batch(n, c * hw * x.dtype.itemsize, target_bytes, vmem_limit)
    grid = (pl.cdiv(n, tb),)          # ragged tail block is masked by Pallas

    out = pl.pallas_call(
        functools.partial(_eca_kernel, k=k, inv_hw=1.0 / hw),
        out_shape=jax.ShapeDtypeStruct((n, c, hw), x.dtype),
        grid_spec=pl.GridSpec(
            grid=grid,
            in_specs=[
                pl.BlockSpec(memory_space=pltpu.MemorySpace.SMEM),   # conv weights
                pl.BlockSpec((tb, c, hw), lambda b: (b, 0, 0)),      # x block
            ],
            out_specs=pl.BlockSpec((tb, c, hw), lambda b: (b, 0, 0)),
        ),
        compiler_params=pltpu.CompilerParams(
            dimension_semantics=("parallel",),
            vmem_limit_bytes=vmem_limit),
    )(w.astype(jnp.float32), xf)
    return out.reshape(n, c, h, wd)


def eca_reference(x, w):
    """Pure-JAX reference matching the PyTorch forward."""
    n, c, h, wd = x.shape
    k = w.shape[0]
    pad = (k - 1) // 2
    pooled = x.astype(jnp.float32).mean(axis=(2, 3))                  # (N, C)
    padded = jnp.pad(pooled, ((0, 0), (pad, pad)))
    y = jnp.zeros_like(pooled)
    for j in range(k):
        y = y + w[j] * padded[:, j:j + c]
    gate = jax.nn.sigmoid(y)
    return x * gate[:, :, None, None].astype(x.dtype)


if __name__ == "__main__":
    # Shapes consistent with the module: ECA(input_channels=128) -> k_size = 5
    N, C, H, W = 2, 128, 16, 16          # HW = 256 -> lane-dense last dim
    gamma, b = 2, 1
    t = int(abs((math.log(C, 2) + b) / gamma))
    k_size = t if t % 2 else t + 1        # = 5 for C=128

    key = jax.random.PRNGKey(0)
    kx, kw = jax.random.split(key)
    x = jax.random.normal(kx, (N, C, H, W), dtype=jnp.float32)
    # Deterministic Conv1d(1, 1, k_size, bias=False) weight (kaiming-uniform style)
    bound = 1.0 / math.sqrt(1 * k_size)
    w = jax.random.uniform(kw, (k_size,), dtype=jnp.float32,
                           minval=-bound, maxval=bound)

    out = eca_forward(x, w)
    out = jax.block_until_ready(out)

    ref = eca_reference(x, w)
    np.testing.assert_allclose(np.asarray(out), np.asarray(ref),
                               rtol=1e-5, atol=1e-5)
    print("KERNEL_OK")
</pallas_src>

<mosaic_0001>
module attributes {stable_mosaic.version = 11 : i64} {
  func.func @_eca_kernel(%arg0: i32, %arg1: memref<5xf32, #tpu.memory_space<smem>>, %arg2: memref<1x128x256xf32, #tpu.memory_space<vmem>>, %arg3: memref<1x128x256xf32, #tpu.memory_space<vmem>>) attributes {dimension_semantics = [#tpu.dimension_semantics<parallel>], iteration_bounds = array<i64: 2>, scalar_prefetch = 0 : i64, scratch_operands = 0 : i64, tpu.core_type = #tpu.core_type<tc>, window_params = [{transform_indices = @transform_0, window_bounds = array<i64: 5>}, {transform_indices = @transform_1, window_bounds = array<i64: 1, 128, 256>}, {transform_indices = @transform_2, window_bounds = array<i64: 1, 128, 256>}]} {
    %c0 = arith.constant 0 : index
    %c0_0 = arith.constant 0 : index
    %c0_1 = arith.constant 0 : index
    %0 = vector.load %arg2[%c0, %c0_0, %c0_1] : memref<1x128x256xf32, #tpu.memory_space<vmem>>, vector<1x128x256xf32>
    %cst = arith.constant dense<0.000000e+00> : vector<1x128xf32>
    %1 = vector.multi_reduction <add>, %0, %cst [2] : vector<1x128x256xf32> to vector<1x128xf32>
    %cst_2 = arith.constant 3.906250e-03 : f32
    %2 = vector.broadcast %cst_2 : f32 to vector<1x128xf32>
    %3 = arith.mulf %1, %2 : vector<1x128xf32>
    %4 = tpu.iota {dimensions = array<i32: 1>} : vector<1x128xi32>
    %cst_3 = arith.constant 0.000000e+00 : f32
    %5 = vector.broadcast %cst_3 : f32 to vector<1x128xf32>
    %c2_i32 = arith.constant 2 : i32
    %6 = tpu.dynamic_rotate %3 by %c2_i32 dim 1 : vector<1x128xf32>, i32 -> vector<1x128xf32>
    %c2_i32_4 = arith.constant 2 : i32
    %7 = vector.broadcast %c2_i32_4 : i32 to vector<1x128xi32>
    %8 = arith.cmpi sge, %4, %7 : vector<1x128xi32>
    %c130_i32 = arith.constant 130 : i32
    %9 = vector.broadcast %c130_i32 : i32 to vector<1x128xi32>
    %10 = arith.cmpi slt, %4, %9 : vector<1x128xi32>
    %11 = arith.andi %8, %10 : vector<1x128xi1>
    %c0_5 = arith.constant 0 : index
    %12 = memref.load %arg1[%c0_5] : memref<5xf32, #tpu.memory_space<smem>>
    %cst_6 = arith.constant 0.000000e+00 : f32
    %13 = vector.broadcast %cst_6 : f32 to vector<1x128xf32>
    %14 = arith.select %11, %6, %13 : vector<1x128xi1>, vector<1x128xf32>
    %15 = vector.broadcast %12 : f32 to vector<1x128xf32>
    %16 = arith.mulf %15, %14 : vector<1x128xf32>
    %17 = arith.addf %5, %16 : vector<1x128xf32>
    %c1_i32 = arith.constant 1 : i32
    %18 = tpu.dynamic_rotate %3 by %c1_i32 dim 1 : vector<1x128xf32>, i32 -> vector<1x128xf32>
    %c1_i32_7 = arith.constant 1 : i32
    %19 = vector.broadcast %c1_i32_7 : i32 to vector<1x128xi32>
    %20 = arith.cmpi sge, %4, %19 : vector<1x128xi32>
    %c129_i32 = arith.constant 129 : i32
    %21 = vector.broadcast %c129_i32 : i32 to vector<1x128xi32>
    %22 = arith.cmpi slt, %4, %21 : vector<1x128xi32>
    %23 = arith.andi %20, %22 : vector<1x128xi1>
    %c1 = arith.constant 1 : index
    %24 = memref.load %arg1[%c1] : memref<5xf32, #tpu.memory_space<smem>>
    %cst_8 = arith.constant 0.000000e+00 : f32
    %25 = vector.broadcast %cst_8 : f32 to vector<1x128xf32>
    %26 = arith.select %23, %18, %25 : vector<1x128xi1>, vector<1x128xf32>
    %27 = vector.broadcast %24 : f32 to vector<1x128xf32>
    %28 = arith.mulf %27, %26 : vector<1x128xf32>
    %29 = arith.addf %17, %28 : vector<1x128xf32>
    %c0_i32 = arith.constant 0 : i32
    %30 = vector.broadcast %c0_i32 : i32 to vector<1x128xi32>
    %31 = arith.cmpi sge, %4, %30 : vector<1x128xi32>
    %c128_i32 = arith.constant 128 : i32
    %32 = vector.broadcast %c128_i32 : i32 to vector<1x128xi32>
    %33 = arith.cmpi slt, %4, %32 : vector<1x128xi32>
    %34 = arith.andi %31, %33 : vector<1x128xi1>
    %c2 = arith.constant 2 : index
    %35 = memref.load %arg1[%c2] : memref<5xf32, #tpu.memory_space<smem>>
    %cst_9 = arith.constant 0.000000e+00 : f32
    %36 = vector.broadcast %cst_9 : f32 to vector<1x128xf32>
    %37 = arith.select %34, %3, %36 : vector<1x128xi1>, vector<1x128xf32>
    %38 = vector.broadcast %35 : f32 to vector<1x128xf32>
    %39 = arith.mulf %38, %37 : vector<1x128xf32>
    %40 = arith.addf %29, %39 : vector<1x128xf32>
    %c127_i32 = arith.constant 127 : i32
    %41 = tpu.dynamic_rotate %3 by %c127_i32 dim 1 : vector<1x128xf32>, i32 -> vector<1x128xf32>
    %c-1_i32 = arith.constant -1 : i32
    %42 = vector.broadcast %c-1_i32 : i32 to vector<1x128xi32>
    %43 = arith.cmpi sge, %4, %42 : vector<1x128xi32>
    %c127_i32_10 = arith.constant 127 : i32
    %44 = vector.broadcast %c127_i32_10 : i32 to vector<1x128xi32>
    %45 = arith.cmpi slt, %4, %44 : vector<1x128xi32>
    %46 = arith.andi %43, %45 : vector<1x128xi1>
    %c3 = arith.constant 3 : index
    %47 = memref.load %arg1[%c3] : memref<5xf32, #tpu.memory_space<smem>>
    %cst_11 = arith.constant 0.000000e+00 : f32
    %48 = vector.broadcast %cst_11 : f32 to vector<1x128xf32>
    %49 = arith.select %46, %41, %48 : vector<1x128xi1>, vector<1x128xf32>
    %50 = vector.broadcast %47 : f32 to vector<1x128xf32>
    %51 = arith.mulf %50, %49 : vector<1x128xf32>
    %52 = arith.addf %40, %51 : vector<1x128xf32>
    %c126_i32 = arith.constant 126 : i32
    %53 = tpu.dynamic_rotate %3 by %c126_i32 dim 1 : vector<1x128xf32>, i32 -> vector<1x128xf32>
    %c-2_i32 = arith.constant -2 : i32
    %54 = vector.broadcast %c-2_i32 : i32 to vector<1x128xi32>
    %55 = arith.cmpi sge, %4, %54 : vector<1x128xi32>
    %c126_i32_12 = arith.constant 126 : i32
    %56 = vector.broadcast %c126_i32_12 : i32 to vector<1x128xi32>
    %57 = arith.cmpi slt, %4, %56 : vector<1x128xi32>
    %58 = arith.andi %55, %57 : vector<1x128xi1>
    %c4 = arith.constant 4 : index
    %59 = memref.load %arg1[%c4] : memref<5xf32, #tpu.memory_space<smem>>
    %cst_13 = arith.constant 0.000000e+00 : f32
    %60 = vector.broadcast %cst_13 : f32 to vector<1x128xf32>
    %61 = arith.select %58, %53, %60 : vector<1x128xi1>, vector<1x128xf32>
    %62 = vector.broadcast %59 : f32 to vector<1x128xf32>
    %63 = arith.mulf %62, %61 : vector<1x128xf32>
    %64 = arith.addf %52, %63 : vector<1x128xf32>
    %65 = arith.negf %64 : vector<1x128xf32>
    %66 = math.exp %65 : vector<1x128xf32>
    %cst_14 = arith.constant 1.000000e+00 : f32
    %67 = vector.broadcast %cst_14 : f32 to vector<1x128xf32>
    %68 = arith.addf %67, %66 : vector<1x128xf32>
    %69 = arith.divf %67, %68 : vector<1x128xf32>
    %c0_15 = arith.constant 0 : index
    %c0_16 = arith.constant 0 : index
    %c0_17 = arith.constant 0 : index
    %70 = vector.load %arg2[%c0_15, %c0_16, %c0_17] : memref<1x128x256xf32, #tpu.memory_space<vmem>>, vector<1x128x256xf32>
    %71 = vector.shape_cast %69 : vector<1x128xf32> to vector<1x128x1xf32>
    %72 = vector.broadcast %71 : vector<1x128x1xf32> to vector<1x128x256xf32>
    %73 = arith.mulf %70, %72 : vector<1x128x256xf32>
    %c0_18 = arith.constant 0 : index
    %c0_19 = arith.constant 0 : index
    %c0_20 = arith.constant 0 : index
    %74 = vector.load %arg3[%c0_18, %c0_19, %c0_20] : memref<1x128x256xf32, #tpu.memory_space<vmem>>, vector<1x128x256xf32>
    tpu.vector_store %arg3[%c0_18, %c0_19, %c0_20], %73 {strides = array<i32>} : memref<1x128x256xf32, #tpu.memory_space<vmem>>, vector<1x128x256xf32>,
    return
  }
  func.func @transform_0(%arg0: i32) -> i32 {
    %c0_i32 = arith.constant 0 : i32
    %c0_i32_0 = arith.constant 0 : i32
    return %c0_i32 : i32
  }
  func.func @transform_1(%arg0: i32) -> (i32, i32, i32) {
    %c0_i32 = arith.constant 0 : i32
    %c0_i32_0 = arith.constant 0 : i32
    %c0_i32_1 = arith.constant 0 : i32
    return %arg0, %c0_i32, %c0_i32_0 : i32, i32, i32
  }
  func.func @transform_2(%arg0: i32) -> (i32, i32, i32) {
    %c0_i32 = arith.constant 0 : i32
    %c0_i32_0 = arith.constant 0 : i32
    %c0_i32_1 = arith.constant 0 : i32
    return %arg0, %c0_i32, %c0_i32_0 : i32, i32, i32
  }
}

</mosaic_0001>

<llo_original>
// kernel: tpu_custom_call.1
$region0: #{tpu_custom_call.1}
  #allocation0 [shape = 'u32[]', space=smem, size = 0x4, offset = 0x4, fixed_abs, tag = 'smem constant byte address 0x4 - core index']
  #allocation1 [shape = 'u32[72,128]{1,0:T(1,128)}', space=vmem, size = 0x9000, scoped, tag = 'internal scratch']
  %s0 = inlined_call_operand.hbm [shape: f32[5], index: 0, kind: input, shape index: {}]
  %s1 = inlined_call_operand.hbm [shape: f32[2,128,256], index: 1, kind: input, shape index: {}]
  %s2 = inlined_call_operand.hbm [shape: f32[2,128,256], index: 2, kind: output, shape index: {}]
  %s3 = sld [smem:[#allocation0]]
  $region49: #{tpu_custom_call.1} parent=0
    _
  %s5 = ssub.s32 1, %s3
  %s6 = scalar_select 0, %s5, %s3
  $region1: #{tpu_custom_call.1} parent=0
    #allocation2 [shape = 'u8[512]{0}', space=smem, size = 0x200, scoped, tag = 'input window, operand 0, single buffered']
    #allocation3 [shape = 's32[2]{0}', space=sflag, size = 0x8, scoped, tag = 'scoped memory for tpu_custom_call.1']
    #allocation4 [shape = 's32[2]{0}', space=sflag, size = 0x8, scoped, tag = 'scoped memory for tpu_custom_call.1']
    #allocation5 [shape = 's32[2]{0}', space=sflag, size = 0x8, scoped, tag = 'scoped memory for tpu_custom_call.1']
    #allocation6 [shape = 'u8[262144]{0}', space=vmem, size = 0x40000, scoped, tag = 'input window, operand 1']
    #allocation7 [shape = 'u8[262144]{0}', space=vmem, size = 0x40000, scoped, tag = 'output window, operand 0']
    %7 = vsyncpa [#allocation5], 0
    %8 = vsyncpa [#allocation3], 0
    %s9 = scalar_lea.sflag [#allocation3], 1
    %10 = vsyncpa %s9, 0
    %11 = vsyncpa [#allocation4], 0
    %s12 = scalar_lea.sflag [#allocation4], 1
    %13 = vsyncpa %s12, 0
    loop: start=0, step=1, limit=4
    $region2: #{tpu_custom_call.1} parent=1 // loop_pre_header
      _
    $region3: #{tpu_custom_call.1} parent=1 // loop_header
      %s15 = sphi 0, %s19
      %p16 = scmp.ge.s32.totalorder %s15, 4
      %s23 = sphi 0, %s23
      %s25 = sphi 0, %s23
      %s26 = sphi 0, %s25
      %s40 = sphi 0, %s26
      %s46 = sphi 0, %s48
      %s49 = sphi 0, %s46
      %s50 = sphi 0, %s49
      %s66 = sphi 0, %s50
      %s72 = sphi 0, %s74
      %s75 = sphi 0, %s72
      %s76 = sphi 0, %s75
      %s92 = sphi 0, %s76
    $region4: #{tpu_custom_call.1} parent=1 // loop_header_branch
      %18 = sbr.rel (%p16) target = $region8
    $region5: #{tpu_custom_call.1} parent=1 // loop_body
      %s20 = ssub.s32 %s15, 1
      %s21 = ssub.s32 %s15, 2
      %s22 = sadd.s32 %s15, 1
      %s24 = sadd.s32 %s23, 1
      %p27 = scmp.eq.s32.totalorder %s15, 1
      %p28 = scmp.ne.s32.totalorder %s23, %s25
      %p29 = scmp.eq.s32.totalorder %s15, 0
      %p30 = por %p28, %p29
      %p31 = scmp.ne.s32.totalorder %s23, %s25
      %p32 = scmp.eq.s32.totalorder %s20, 1
      %p33 = por %p31, %p32
      %p34 = scmp.ne.s32.totalorder %s25, %s26
      %p35 = scmp.eq.s32.totalorder %s20, 0
      %p36 = por %p34, %p35
      %p37 = scmp.ne.s32.totalorder %s25, %s26
      %p38 = scmp.eq.s32.totalorder %s21, 1
      %p39 = por %p37, %p38
      %p41 = scmp.ne.s32.totalorder %s26, %s40
      %p42 = scmp.eq.s32.totalorder %s21, 0
      %p43 = por %p41, %p42
      %s44 = ssub.s32 %s15, %s22
      %p45 = scmp.eq.s32.totalorder %s44, 0
      %s47 = sadd.s32 %s46, 1
      %s48 = scalar_select %p45, %s46, %s47
      %p51 = pneg %p45
      %p52 = scmp.eq.s32.totalorder %s15, 1
      %p53 = por %p51, %p52
      %p54 = scmp.ne.s32.totalorder %s46, %s49
      %p55 = scmp.eq.s32.totalorder %s15, 0
      %p56 = por %p54, %p55
      %p57 = scmp.ne.s32.totalorder %s46, %s49
      %p58 = scmp.eq.s32.totalorder %s20, 1
      %p59 = por %p57, %p58
      %p60 = scmp.ne.s32.totalorder %s49, %s50
      %p61 = scmp.eq.s32.totalorder %s20, 0
      %p62 = por %p60, %p61
      %p63 = scmp.ne.s32.totalorder %s49, %s50
      %p64 = scmp.eq.s32.totalorder %s21, 1
      %p65 = por %p63, %p64
      %p67 = scmp.ne.s32.totalorder %s50, %s66
      %p68 = scmp.eq.s32.totalorder %s21, 0
      %p69 = por %p67, %p68
      %s70 = ssub.s32 %s15, %s22
      %p71 = scmp.eq.s32.totalorder %s70, 0
      %s73 = sadd.s32 %s72, 1
      %s74 = scalar_select %p71, %s72, %s73
      %p77 = pneg %p71
      %p78 = scmp.eq.s32.totalorder %s15, 1
      %p79 = por %p77, %p78
      %p80 = scmp.ne.s32.totalorder %s72, %s75
      %p81 = scmp.eq.s32.totalorder %s15, 0
      %p82 = por %p80, %p81
      %p83 = scmp.ne.s32.totalorder %s72, %s75
      %p84 = scmp.eq.s32.totalorder %s20, 1
      %p85 = por %p83, %p84
      %p86 = scmp.ne.s32.totalorder %s75, %s76
      %p87 = scmp.eq.s32.totalorder %s20, 0
      %p88 = por %p86, %p87
      %p89 = scmp.ne.s32.totalorder %s75, %s76
      %p90 = scmp.eq.s32.totalorder %s21, 1
      %p91 = por %p89, %p90
      %p93 = scmp.ne.s32.totalorder %s76, %s92
      %p94 = scmp.eq.s32.totalorder %s21, 0
      %p95 = por %p93, %p94
      %p96 = scmp.le.s32.totalorder 1, %s15
      %p97 = scmp.lt.s32.totalorder %s15, 3
      %p98 = pnand %p96, %p97
      %p99 = pneg %p98
      // Predicated region
      $region9: #{tpu_custom_call.1} parent=5 // pred_check
        _
      $region10: #{tpu_custom_call.1} parent=5 // pred_check_branch
        %101 = sbr.rel (%p98) target = $region12
      $region11: #{tpu_custom_call.1} parent=5 // pred_region
        %s102 = ssub.s32 %s15, 1
        // Predicated region
        $region13: #{tpu_custom_call.1} parent=11 // pred_check
          %p103 = pneg %p36
        $region14: #{tpu_custom_call.1} parent=11 // pred_check_branch
          %105 = sbr.rel (%p103) target = $region16
        $region15: #{tpu_custom_call.1} parent=11 // pred_region
          %107 = vsyncadd [#allocation5], 0
          %s109 = sshll.u32 %s0, 4
          %s110 = int_to_ptr.hbm [resolvable:$true] %s109
          %112 = dma.hbm_to_smem %s110, 16, [#allocation2], [#allocation5]
        $region16: #{tpu_custom_call.1} parent=11 // pred_fallthru
          _
      $region12: #{tpu_custom_call.1} parent=5 // pred_fallthru
        _
      %p113 = scmp.lt.s32.totalorder %s15, 2
      // Predicated region
      $region17: #{tpu_custom_call.1} parent=5 // pred_check
        %p114 = pneg %p113
      $region18: #{tpu_custom_call.1} parent=5 // pred_check_branch
        %116 = sbr.rel (%p114) target = $region20
      $region19: #{tpu_custom_call.1} parent=5 // pred_region
        // Predicated region
        $region21: #{tpu_custom_call.1} parent=19 // pred_check
          %p117 = pneg %p56
        $region22: #{tpu_custom_call.1} parent=19 // pred_check_branch
          %119 = sbr.rel (%p117) target = $region24
        $region23: #{tpu_custom_call.1} parent=19 // pred_region
          %s120 = sand.u32 %s46, 1
          %s121 = scalar_lea.sflag [#allocation3], %s120
          %s122 = sand.u32 %s46, 1
          %s123 = smul.addr %s122, 256
          %s124 = scalar_lea.vmem [#allocation6], %s123
          %126 = vsyncadd %s121, 0
          %s127 = smul.addr %s15, 32
          %s128 = smul.addr %s127, 8
          %s129 = scalar_lea.hbm %s1, %s128
          %s130 = sshll.u32 %s129, 4
          %s131 = int_to_ptr.hbm [resolvable:$true] %s130
          %s132 = sshll.u32 %s124, 4
          %s133 = int_to_ptr.vmem [resolvable:$true] %s132
          %138 = dma.hbm_to_vmem [thread:$0]  %s131, 4096, %s133, %s121, 256, 256, 16
        $region24: #{tpu_custom_call.1} parent=19 // pred_fallthru
          _
      $region20: #{tpu_custom_call.1} parent=5 // pred_fallthru
        _
      %p139 = scmp.le.s32.totalorder 1, %s15
      %p140 = scmp.lt.s32.totalorder %s15, 3
      %p141 = pnand %p139, %p140
      %p142 = pneg %p141
      // Predicated region
      $region25: #{tpu_custom_call.1} parent=5 // pred_check
        _
      $region26: #{tpu_custom_call.1} parent=5 // pred_check_branch
        %144 = sbr.rel (%p141) target = $region28
      $region27: #{tpu_custom_call.1} parent=5 // pred_region
        %s145 = ssub.s32 %s15, 1
        // Predicated region
        $region29: #{tpu_custom_call.1} parent=27 // pred_check
          %p146 = pneg %p36
        $region30: #{tpu_custom_call.1} parent=27 // pred_check_branch
          %148 = sbr.rel (%p146) target = $region32
        $region31: #{tpu_custom_call.1} parent=27 // pred_region
          %150 = dma.done [#allocation5], 16
        $region32: #{tpu_custom_call.1} parent=27 // pred_fallthru
          _
        %s151 = sand.u32 %s49, 1
        %s152 = scalar_lea.sflag [#allocation3], %s151
        %s153 = sand.u32 %s49, 1
        %s154 = smul.addr %s153, 256
        %s155 = scalar_lea.vmem [#allocation6], %s154
        // Predicated region
        $region33: #{tpu_custom_call.1} parent=27 // pred_check
          %p156 = pneg %p62
        $region34: #{tpu_custom_call.1} parent=27 // pred_check_branch
          %158 = sbr.rel (%p156) target = $region36
        $region35: #{tpu_custom_call.1} parent=27 // pred_region
          %160 = dma.done %s152, 4096
        $region36: #{tpu_custom_call.1} parent=27 // pred_fallthru
          _
        %161 = sfence
        %p162 = pneg %p36
        %p163 = pneg %p33
        %s164 = sand.u32 %s49, 1
        %s165 = scalar_lea.sflag [#allocation3], %s164
        %s166 = sand.u32 %s49, 1
        %s167 = smul.addr %s166, 256
        %s168 = scalar_lea.vmem [#allocation6], %s167
        %p169 = pneg %p62
        %p170 = pneg %p59
        %p171 = pneg %p88
        %p172 = pneg %p85
        %s173 = sand.u32 %s75, 1
        %s174 = scalar_lea.sflag [#allocation4], %s173
        %s175 = sand.u32 %s75, 1
        %s176 = smul.addr %s175, 256
        %s177 = scalar_lea.vmem [#allocation7], %s176
        %v178 = vld [vmem:[%s155] sm:$0xff]
        %v179 = vld [vmem:[%s155 + $0x8] sm:$0xff]
        %v180 = vld [vmem:[%s155 + $0x10] sm:$0xff]
        %v181 = vld [vmem:[%s155 + $0x18] sm:$0xff]
        %v182 = vld [vmem:[%s155 + $0x20] sm:$0xff]
        %v183 = vld [vmem:[%s155 + $0x28] sm:$0xff]
        %v184 = vld [vmem:[%s155 + $0x30] sm:$0xff]
        %v185 = vld [vmem:[%s155 + $0x38] sm:$0xff]
        %v186 = vld [vmem:[%s155 + $0x40] sm:$0xff]
        %v187 = vld [vmem:[%s155 + $0x48] sm:$0xff]
        %v188 = vld [vmem:[%s155 + $0x50] sm:$0xff]
        %v189 = vld [vmem:[%s155 + $0x58] sm:$0xff]
        %v190 = vld [vmem:[%s155 + $0x60] sm:$0xff]
        %v191 = vld [vmem:[%s155 + $0x68] sm:$0xff]
        %v192 = vld [vmem:[%s155 + $0x70] sm:$0xff]
        %v193 = vld [vmem:[%s155 + $0x78] sm:$0xff]
        %v194 = vld [vmem:[%s155 + $0x80] sm:$0xff]
        %v195 = vld [vmem:[%s155 + $0x88] sm:$0xff]
        %v196 = vld [vmem:[%s155 + $0x90] sm:$0xff]
        %v197 = vld [vmem:[%s155 + $0x98] sm:$0xff]
        %v198 = vld [vmem:[%s155 + $0xa0] sm:$0xff]
        %v199 = vld [vmem:[%s155 + $0xa8] sm:$0xff]
        %v200 = vld [vmem:[%s155 + $0xb0] sm:$0xff]
        %v201 = vld [vmem:[%s155 + $0xb8] sm:$0xff]
        %v202 = vld [vmem:[%s155 + $0xc0] sm:$0xff]
        %v203 = vld [vmem:[%s155 + $0xc8] sm:$0xff]
        %v204 = vld [vmem:[%s155 + $0xd0] sm:$0xff]
        %v205 = vld [vmem:[%s155 + $0xd8] sm:$0xff]
        %v206 = vld [vmem:[%s155 + $0xe0] sm:$0xff]
        %v207 = vld [vmem:[%s155 + $0xe8] sm:$0xff]
        %v208 = vld [vmem:[%s155 + $0xf0] sm:$0xff]
        %v209 = vld [vmem:[%s155 + $0xf8] sm:$0xff]
        %v210 = vadd.f32 %v178, %v179
        %211 = vadd.xlane.f32.xlu0 %v210
        %v212 = vpop.xlane.xlu0 %211
        %v213 = vadd.f32 %v180, %v181
        %214 = vadd.xlane.f32.xlu0 %v213
        %v215 = vpop.xlane.xlu0 %214
        %v216 = vadd.f32 %v182, %v183
        %217 = vadd.xlane.f32.xlu0 %v216
        %v218 = vpop.xlane.xlu0 %217
        %v219 = vadd.f32 %v184, %v185
        %220 = vadd.xlane.f32.xlu0 %v219
        %v221 = vpop.xlane.xlu0 %220
        %v222 = vadd.f32 %v186, %v187
        %223 = vadd.xlane.f32.xlu0 %v222
        %v224 = vpop.xlane.xlu0 %223
        %v225 = vadd.f32 %v188, %v189
        %226 = vadd.xlane.f32.xlu0 %v225
        %v227 = vpop.xlane.xlu0 %226
        %v228 = vadd.f32 %v190, %v191
        %229 = vadd.xlane.f32.xlu0 %v228
        %v230 = vpop.xlane.xlu0 %229
        %v231 = vadd.f32 %v192, %v193
        %232 = vadd.xlane.f32.xlu0 %v231
        %v233 = vpop.xlane.xlu0 %232
        %v234 = vadd.f32 %v194, %v195
        %235 = vadd.xlane.f32.xlu0 %v234
        %v236 = vpop.xlane.xlu0 %235
        %v237 = vadd.f32 %v196, %v197
        %238 = vadd.xlane.f32.xlu0 %v237
        %v239 = vpop.xlane.xlu0 %238
        %v240 = vadd.f32 %v198, %v199
        %241 = vadd.xlane.f32.xlu0 %v240
        %v242 = vpop.xlane.xlu0 %241
        %v243 = vadd.f32 %v200, %v201
        %244 = vadd.xlane.f32.xlu0 %v243
        %v245 = vpop.xlane.xlu0 %244
        %v246 = vadd.f32 %v202, %v203
        %247 = vadd.xlane.f32.xlu0 %v246
        %v248 = vpop.xlane.xlu0 %247
        %v249 = vadd.f32 %v204, %v205
        %250 = vadd.xlane.f32.xlu0 %v249
        %v251 = vpop.xlane.xlu0 %250
        %v252 = vadd.f32 %v206, %v207
        %253 = vadd.xlane.f32.xlu0 %v252
        %v254 = vpop.xlane.xlu0 %253
        %v255 = vadd.f32 %v208, %v209
        %256 = vadd.xlane.f32.xlu0 %v255
        %v257 = vpop.xlane.xlu0 %256
        %v258 = vmul.f32 %v212, 0.00390625
        %v259 = vmul.f32 %v215, 0.00390625
        %v260 = vmul.f32 %v218, 0.00390625
        %v261 = vmul.f32 %v221, 0.00390625
        %v262 = vmul.f32 %v224, 0.00390625
        %v263 = vmul.f32 %v227, 0.00390625
        %v264 = vmul.f32 %v230, 0.00390625
        %v265 = vmul.f32 %v233, 0.00390625
        %v266 = vmul.f32 %v236, 0.00390625
        %v267 = vmul.f32 %v239, 0.00390625
        %v268 = vmul.f32 %v242, 0.00390625
        %v269 = vmul.f32 %v245, 0.00390625
        %v270 = vmul.f32 %v248, 0.00390625
        %v271 = vmul.f32 %v251, 0.00390625
        %v272 = vmul.f32 %v254, 0.00390625
        %v273 = vmul.f32 %v257, 0.00390625
        %v274 = vlaneseq
        %v275 = vand.u32 %v274, 127
        %v292 = vperm.slane %v258, %v275
        %v293 = vadd.s32 %v275, 4294967288
        %v294 = vperm.slane %v259, %v293
        %vm295 = vcmask 130112
        %v296 = vsel %vm295, %v294, %v292
        %v297 = vadd.s32 %v275, 4294967280
        %v298 = vperm.slane %v260, %v297
        %vm299 = vcmask 195712
        %v300 = vsel %vm299, %v298, %v296
        %v301 = vadd.s32 %v275, 4294967272
        %v302 = vperm.slane %v261, %v301
        %vm303 = vcmask 261312
        %v304 = vsel %vm303, %v302, %v300
        %v305 = vadd.s32 %v275, 4294967264
        %v306 = vperm.slane %v262, %v305
        %vm307 = vcmask 326912
        %v308 = vsel %vm307, %v306, %v304
        %v309 = vadd.s32 %v275, 4294967256
        %v310 = vperm.slane %v263, %v309
        %vm311 = vcmask 392512
        %v312 = vsel %vm311, %v310, %v308
        %v313 = vadd.s32 %v275, 4294967248
        %v314 = vperm.slane %v264, %v313
        %vm315 = vcmask 458112
        %v316 = vsel %vm315, %v314, %v312
        %v317 = vadd.s32 %v275, 4294967240
        %v318 = vperm.slane %v265, %v317
        %vm319 = vcmask 523712
        %v320 = vsel %vm319, %v318, %v316
        %v321 = vadd.s32 %v275, 4294967232
        %v322 = vperm.slane %v266, %v321
        %vm323 = vcmask 589312
        %v324 = vsel %vm323, %v322, %v320
        %v325 = vadd.s32 %v275, 4294967224
        %v326 = vperm.slane %v267, %v325
        %vm327 = vcmask 654912
        %v328 = vsel %vm327, %v326, %v324
        %v329 = vadd.s32 %v275, 4294967216
        %v330 = vperm.slane %v268, %v329
        %vm331 = vcmask 720512
        %v332 = vsel %vm331, %v330, %v328
        %v333 = vadd.s32 %v275, 4294967208
        %v334 = vperm.slane %v269, %v333
        %vm335 = vcmask 786112
        %v336 = vsel %vm335, %v334, %v332
        %v337 = vadd.s32 %v275, 4294967200
        %v338 = vperm.slane %v270, %v337
        %vm339 = vcmask 851712
        %v340 = vsel %vm339, %v338, %v336
        %v341 = vadd.s32 %v275, 4294967192
        %v342 = vperm.slane %v271, %v341
        %vm343 = vcmask 917312
        %v344 = vsel %vm343, %v342, %v340
        %v345 = vadd.s32 %v275, 4294967184
        %v346 = vperm.slane %v272, %v345
        %vm347 = vcmask 982912
        %v348 = vsel %vm347, %v346, %v344
        %v349 = vadd.s32 %v275, 4294967176
        %v350 = vperm.slane %v273, %v349
        %vm351 = vcmask 1048512
        %v352 = vsel %vm351, %v350, %v348
        %354 = vrot.lane.b32.xlu0 %v352, 2
        %v355 = vpop.permute.xlu0 %354
        %vm356 = vcmp.ge.s32.totalorder %v275, 2
        %vm357 = vcmp.lt.s32.totalorder %v275, 130
        %vm358 = vmand %vm356, %vm357
        %s359 = sld [smem:[#allocation2]]
        %v360 = vsel %vm358, %v355, 0.0
        %v361 = vstv %s359
        %v362 = vmul.f32 %v361, %v360
        %v363 = vadd.f32 %v362, 0.0
        %364 = vrot.lane.b32.xlu0 %v352, 1
        %v365 = vpop.permute.xlu0 %364
        %vm366 = vcmp.ge.s32.totalorder %v275, 1
        %vm367 = vcmp.lt.s32.totalorder %v275, 129
        %vm368 = vmand %vm366, %vm367
        %s369 = sld [smem:[#allocation2 + $0x1]]
        %v370 = vsel %vm368, %v365, 0.0
        %v371 = vstv %s369
        %v372 = vmul.f32 %v371, %v370
        %v373 = vadd.f32 %v363, %v372
        %vm374 = vcmp.ge.s32.totalorder %v275, 0
        %vm375 = vcmp.lt.s32.totalorder %v275, 128
        %vm376 = vmand %vm374, %vm375
        %s377 = sld [smem:[#allocation2 + $0x2]]
        %v378 = vsel %vm376, %v352, 0.0
        %v379 = vstv %s377
        %v380 = vmul.f32 %v379, %v378
        %v381 = vadd.f32 %v373, %v380
        %382 = vrot.lane.b32.xlu0 %v352, 127
        %v383 = vpop.permute.xlu0 %382
        %vm384 = vcmp.ge.s32.totalorder %v275, 4294967295
        %vm385 = vcmp.lt.s32.totalorder %v275, 127
        %vm386 = vmand %vm384, %vm385
        %s387 = sld [smem:[#allocation2 + $0x3]]
        %v388 = vsel %vm386, %v383, 0.0
        %v389 = vstv %s387
        %v390 = vmul.f32 %v389, %v388
        %v391 = vadd.f32 %v381, %v390
        %392 = vrot.lane.b32.xlu0 %v352, 126
        %v393 = vpop.permute.xlu0 %392
        %vm394 = vcmp.ge.s32.totalorder %v275, 4294967294
        %vm395 = vcmp.lt.s32.totalorder %v275, 126
        %vm396 = vmand %vm394, %vm395
        %s397 = sld [smem:[#allocation2 + $0x4]]
        %v398 = vsel %vm396, %v393, 0.0
        %v399 = vstv %s397
        %v400 = vmul.f32 %v399, %v398
        %v401 = vadd.f32 %v391, %v400
        %v402 = vxor.u32 %v401, 2147483648
        %v403 = vmul.f32 %v402, 1.442695
        %v404 = vpow.pop %v403
        %v405 = vadd.f32 %v404, 1.0
        %v406 = vrcp.pop %v405
        %v407 = vmul.f32 %v405, %v406
        %v408 = vsub.f32 1.0, %v407
        %v409 = vmul.f32 %v406, %v408
        %v410 = vadd.f32 %v406, %v409
        %vm411 = vweird.f32 %v405
        %vm412 = vweird.f32 %v406
        %vm413 = vmor %vm411, %vm412
        %v414 = vsel %vm413, %v406, %v410
        %v415 = vand.u32 2147483647, %v405
        %vm416 = vcmp.eq.f32.partialorder %v415, 8.507059e+37
        %v417 = vand.u32 %v405, 2147483648
        %v418 = vor.u32 1.1754944e-38, %v417
        %v419 = vsel %vm416, %v418, %v414
        %v420 = vmul.f32 1.0, %v419
        %v421 = vperm.slane %v420, 0
        %v422 = vlaneseq
        %v423 = vshrl.u32 %v422, 7
        %425 = vset.pattern.permute.xlu0 %v423
        %426 = vperm.xlu0 %425, %v421
        %v427 = vpop.permute.xlu0 %426
        %v428 = vlaneseq
        %v429 = vshrl.u32 %v428, 7
        %v430 = vadd.s32 %v429, 8
        %431 = vset.pattern.permute.xlu0 %v430
        %432 = vperm.xlu0 %431, %v421
        %v433 = vpop.permute.xlu0 %432
        %v434 = vlaneseq
        %v435 = vshrl.u32 %v434, 7
        %v436 = vadd.s32 %v435, 16
        %437 = vset.pattern.permute.xlu0 %v436
        %438 = vperm.xlu0 %437, %v421
        %v439 = vpop.permute.xlu0 %438
        %v440 = vlaneseq
        %v441 = vshrl.u32 %v440, 7
        %v442 = vadd.s32 %v441, 24
        %443 = vset.pattern.permute.xlu0 %v442
        %444 = vperm.xlu0 %443, %v421
        %v445 = vpop.permute.xlu0 %444
        %v446 = vlaneseq
        %v447 = vshrl.u32 %v446, 7
        %v448 = vadd.s32 %v447, 32
        %449 = vset.pattern.permute.xlu0 %v448
        %450 = vperm.xlu0 %449, %v421
        %v451 = vpop.permute.xlu0 %450
        %v452 = vlaneseq
        %v453 = vshrl.u32 %v452, 7
        %v454 = vadd.s32 %v453, 40
        %455 = vset.pattern.permute.xlu0 %v454
        %456 = vperm.xlu0 %455, %v421
        %v457 = vpop.permute.xlu0 %456
        %v458 = vlaneseq
        %v459 = vshrl.u32 %v458, 7
        %v460 = vadd.s32 %v459, 48
        %461 = vset.pattern.permute.xlu0 %v460
        %462 = vperm.xlu0 %461, %v421
        %v463 = vpop.permute.xlu0 %462
        %v464 = vlaneseq
        %v465 = vshrl.u32 %v464, 7
        %v466 = vadd.s32 %v465, 56
        %467 = vset.pattern.permute.xlu0 %v466
        %468 = vperm.xlu0 %467, %v421
        %v469 = vpop.permute.xlu0 %468
        %v470 = vlaneseq
        %v471 = vshrl.u32 %v470, 7
        %v472 = vadd.s32 %v471, 64
        %473 = vset.pattern.permute.xlu0 %v472
        %474 = vperm.xlu0 %473, %v421
        %v475 = vpop.permute.xlu0 %474
        %v476 = vlaneseq
        %v477 = vshrl.u32 %v476, 7
        %v478 = vadd.s32 %v477, 72
        %479 = vset.pattern.permute.xlu0 %v478
        %480 = vperm.xlu0 %479, %v421
        %v481 = vpop.permute.xlu0 %480
        %v482 = vlaneseq
        %v483 = vshrl.u32 %v482, 7
        %v484 = vadd.s32 %v483, 80
        %485 = vset.pattern.permute.xlu0 %v484
        %486 = vperm.xlu0 %485, %v421
        %v487 = vpop.permute.xlu0 %486
        %v488 = vlaneseq
        %v489 = vshrl.u32 %v488, 7
        %v490 = vadd.s32 %v489, 88
        %491 = vset.pattern.permute.xlu0 %v490
        %492 = vperm.xlu0 %491, %v421
        %v493 = vpop.permute.xlu0 %492
        %v494 = vlaneseq
        %v495 = vshrl.u32 %v494, 7
        %v496 = vadd.s32 %v495, 96
        %497 = vset.pattern.permute.xlu0 %v496
        %498 = vperm.xlu0 %497, %v421
        %v499 = vpop.permute.xlu0 %498
        %v500 = vlaneseq
        %v501 = vshrl.u32 %v500, 7
        %v502 = vadd.s32 %v501, 104
        %503 = vset.pattern.permute.xlu0 %v502
        %504 = vperm.xlu0 %503, %v421
        %v505 = vpop.permute.xlu0 %504
        %v506 = vlaneseq
        %v507 = vshrl.u32 %v506, 7
        %v508 = vadd.s32 %v507, 112
        %509 = vset.pattern.permute.xlu0 %v508
        %510 = vperm.xlu0 %509, %v421
        %v511 = vpop.permute.xlu0 %510
        %v512 = vlaneseq
        %v513 = vshrl.u32 %v512, 7
        %v514 = vadd.s32 %v513, 120
        %515 = vset.pattern.permute.xlu0 %v514
        %516 = vperm.xlu0 %515, %v421
        %v517 = vpop.permute.xlu0 %516
        %v518 = vmul.f32 %v178, %v427
        %v519 = vmul.f32 %v179, %v427
        %v520 = vmul.f32 %v180, %v433
        %v521 = vmul.f32 %v181, %v433
        %v522 = vmul.f32 %v182, %v439
        %v523 = vmul.f32 %v183, %v439
        %v524 = vmul.f32 %v184, %v445
        %v525 = vmul.f32 %v185, %v445
        %v526 = vmul.f32 %v186, %v451
        %v527 = vmul.f32 %v187, %v451
        %v528 = vmul.f32 %v188, %v457
        %v529 = vmul.f32 %v189, %v457
        %v530 = vmul.f32 %v190, %v463
        %v531 = vmul.f32 %v191, %v463
        %v532 = vmul.f32 %v192, %v469
        %v533 = vmul.f32 %v193, %v469
        %v534 = vmul.f32 %v194, %v475
        %v535 = vmul.f32 %v195, %v475
        %v536 = vmul.f32 %v196, %v481
        %v537 = vmul.f32 %v197, %v481
        %v538 = vmul.f32 %v198, %v487
        %v539 = vmul.f32 %v199, %v487
        %v540 = vmul.f32 %v200, %v493
        %v541 = vmul.f32 %v201, %v493
        %v542 = vmul.f32 %v202, %v499
        %v543 = vmul.f32 %v203, %v499
        %v544 = vmul.f32 %v204, %v505
        %v545 = vmul.f32 %v205, %v505
        %v546 = vmul.f32 %v206, %v511
        %v547 = vmul.f32 %v207, %v511
        %v548 = vmul.f32 %v208, %v517
        %v549 = vmul.f32 %v209, %v517
        %550 = vst [vmem:[%s177] sm:$0xff] %v518
        %551 = vst [vmem:[%s177 + $0x8] sm:$0xff] %v519
        %552 = vst [vmem:[%s177 + $0x10] sm:$0xff] %v520
        %553 = vst [vmem:[%s177 + $0x18] sm:$0xff] %v521
        %554 = vst [vmem:[%s177 + $0x20] sm:$0xff] %v522
        %555 = vst [vmem:[%s177 + $0x28] sm:$0xff] %v523
        %556 = vst [vmem:[%s177 + $0x30] sm:$0xff] %v524
        %557 = vst [vmem:[%s177 + $0x38] sm:$0xff] %v525
        %558 = vst [vmem:[%s177 + $0x40] sm:$0xff] %v526
        %559 = vst [vmem:[%s177 + $0x48] sm:$0xff] %v527
        %560 = vst [vmem:[%s177 + $0x50] sm:$0xff] %v528
        %561 = vst [vmem:[%s177 + $0x58] sm:$0xff] %v529
        %562 = vst [vmem:[%s177 + $0x60] sm:$0xff] %v530
        %563 = vst [vmem:[%s177 + $0x68] sm:$0xff] %v531
        %564 = vst [vmem:[%s177 + $0x70] sm:$0xff] %v532
        %565 = vst [vmem:[%s177 + $0x78] sm:$0xff] %v533
        %566 = vst [vmem:[%s177 + $0x80] sm:$0xff] %v534
        %567 = vst [vmem:[%s177 + $0x88] sm:$0xff] %v535
        %568 = vst [vmem:[%s177 + $0x90] sm:$0xff] %v536
        %569 = vst [vmem:[%s177 + $0x98] sm:$0xff] %v537
        %570 = vst [vmem:[%s177 + $0xa0] sm:$0xff] %v538
        %571 = vst [vmem:[%s177 + $0xa8] sm:$0xff] %v539
        %572 = vst [vmem:[%s177 + $0xb0] sm:$0xff] %v540
        %573 = vst [vmem:[%s177 + $0xb8] sm:$0xff] %v541
        %574 = vst [vmem:[%s177 + $0xc0] sm:$0xff] %v542
        %575 = vst [vmem:[%s177 + $0xc8] sm:$0xff] %v543
        %576 = vst [vmem:[%s177 + $0xd0] sm:$0xff] %v544
        %577 = vst [vmem:[%s177 + $0xd8] sm:$0xff] %v545
        %578 = vst [vmem:[%s177 + $0xe0] sm:$0xff] %v546
        %579 = vst [vmem:[%s177 + $0xe8] sm:$0xff] %v547
        %580 = vst [vmem:[%s177 + $0xf0] sm:$0xff] %v548
        %581 = vst [vmem:[%s177 + $0xf8] sm:$0xff] %v549
        %s582 = sand.u32 %s75, 1
        %s583 = scalar_lea.sflag [#allocation4], %s582
        %s584 = sand.u32 %s75, 1
        %s585 = smul.addr %s584, 256
        %s586 = scalar_lea.vmem [#allocation7], %s585
        // Predicated region
        $region37: #{tpu_custom_call.1} parent=27 // pred_check
          %p587 = pneg %p85
        $region38: #{tpu_custom_call.1} parent=27 // pred_check_branch
          %589 = sbr.rel (%p587) target = $region40
        $region39: #{tpu_custom_call.1} parent=27 // pred_region
          %591 = vsyncadd %s583, 0
          %s592 = smul.addr %s20, 32
          %s593 = smul.addr %s592, 8
          %s594 = scalar_lea.hbm %s2, %s593
          %s595 = sshll.u32 %s586, 4
          %s596 = int_to_ptr.vmem [resolvable:$true] %s595
          %s597 = sshll.u32 %s594, 4
          %s598 = int_to_ptr.hbm [resolvable:$true] %s597
          %603 = dma.vmem_to_hbm [thread:$0]  %s596, 4096, %s598, %s583, 256, 256, 16
        $region40: #{tpu_custom_call.1} parent=27 // pred_fallthru
          _
      $region28: #{tpu_custom_call.1} parent=5 // pred_fallthru
        _
      %p604 = scmp.le.s32.totalorder 2, %s15
      // Predicated region
      $region41: #{tpu_custom_call.1} parent=5 // pred_check
        %p605 = pneg %p604
      $region42: #{tpu_custom_call.1} parent=5 // pred_check_branch
        %607 = sbr.rel (%p605) target = $region44
      $region43: #{tpu_custom_call.1} parent=5 // pred_region
        %s608 = ssub.s32 %s15, 2
        // Predicated region
        $region45: #{tpu_custom_call.1} parent=43 // pred_check
          %p609 = pneg %p91
        $region46: #{tpu_custom_call.1} parent=43 // pred_check_branch
          %611 = sbr.rel (%p609) target = $region48
        $region47: #{tpu_custom_call.1} parent=43 // pred_region
          %s612 = sand.u32 %s76, 1
          %s613 = scalar_lea.sflag [#allocation4], %s612
          %s614 = sand.u32 %s76, 1
          %s615 = smul.addr %s614, 256
          %s616 = scalar_lea.vmem [#allocation7], %s615
          %618 = dma.done %s613, 4096
        $region48: #{tpu_custom_call.1} parent=43 // pred_fallthru
          _
      $region44: #{tpu_custom_call.1} parent=5 // pred_fallthru
        _
    $region6: #{tpu_custom_call.1} parent=1 // loop_footer
      %s19 = sadd.s32 1, %s15
    $region7: #{tpu_custom_call.1} parent=1 // loop_footer_branch
      %14 = sbr.rel target = $region3
    $region8: #{tpu_custom_call.1} parent=1 // loop_exit
      _
    %619 = vsyncpa [#allocation3], 1
    %s620 = scalar_lea.sflag [#allocation3], 1
    %621 = vsyncpa %s620, 1
    %622 = vsyncpa [#allocation4], 1
    %s623 = scalar_lea.sflag [#allocation4], 1
    %624 = vsyncpa %s623, 1
    %625 = vsyncpa [#allocation5], 1
    %s626 = scalar_lea.sflag [#allocation5], 1
    %627 = vsyncpa %s626, 1

</llo_original>
